<compile_context>
chip_gen: v6e
topology: v6e:2x2x1
jax: 0.10.0
libtpu: 0.0.40
codegen_flags: <defaults>
</compile_context>

<pallas_src>
import functools

import jax
import jax.numpy as jnp
from jax.experimental import pallas as pl
from jax.experimental.pallas import tpu as pltpu


def _delta_pass(x, window):
    """One delta pass along the time axis (axis=1) with edge replication.

    x: (BB, T, F) float32 -> (BB, T, F) float32
    """
    bb, t, f = x.shape
    if window <= 0:
        return jnp.zeros_like(x)
    first = x[:, 0:1, :]
    last = x[:, t - 1:t, :]
    acc = None
    for j in range(1, window + 1):            # static, fully unrolled stencil
        if j >= t:                            # every tap index clamps to an edge
            fwd = jnp.broadcast_to(last, (bb, t, f))
            bwd = jnp.broadcast_to(first, (bb, t, f))
        else:
            # fwd[t] = x[min(t+j, T-1)],  bwd[t] = x[max(t-j, 0)]
            fwd = jnp.concatenate(
                [x[:, j:, :], jnp.broadcast_to(last, (bb, j, f))], axis=1)
            bwd = jnp.concatenate(
                [jnp.broadcast_to(first, (bb, j, f)), x[:, :t - j, :]], axis=1)
        term = (fwd - bwd) * (1.0 / (2.0 * j))
        acc = term if acc is None else acc + term
    return acc


def _delta_layer_kernel(x_ref, o_ref, *, window):
    x = x_ref[...]                            # (BB, T, F)
    if x.dtype != jnp.float32:                # skip the cast when already f32
        x = x.astype(jnp.float32)
    d = _delta_pass(x, window)                # delta        (VMEM/vregs only)
    dd = _delta_pass(d, window)               # double-delta (VMEM/vregs only)
    f = x.shape[-1]
    if f % 128 == 0:
        # Lane-aligned: three unmasked, full-vreg stores into the out block.
        o_ref[:, :, 0:f] = x.astype(o_ref.dtype)
        o_ref[:, :, f:2 * f] = d.astype(o_ref.dtype)
        o_ref[:, :, 2 * f:3 * f] = dd.astype(o_ref.dtype)
    else:
        # TODO(synk): for 3F not a multiple of 128 the stores are lane-masked;
        # a flattened (B, T*3F) lane-dense layout needs an in-kernel relayout.
        o_ref[...] = jnp.concatenate([x, d, dd], axis=-1).astype(o_ref.dtype)


def _vmem_capacity_bytes():
    try:
        return int(pltpu.get_tpu_info().vmem_capacity_bytes)
    except Exception:                         # API unavailable -> be conservative
        return 64 * 1024 * 1024               # v7x per-TensorCore VMEM


def _largest_divisor_leq(n, cap):
    cap = max(1, min(int(cap), int(n)))
    for d in range(cap, 0, -1):
        if n % d == 0:
            return d
    return 1


def delta_layer_forward(x, window, block_batch=None):
    """x: (B, T, F) -> (B, T, 3F), matching torch delta_layer(window).forward."""
    B, T, F = x.shape
    in_isz = jnp.dtype(x.dtype).itemsize
    out_dtype = x.dtype
    out_isz = jnp.dtype(out_dtype).itemsize

    # ---- device-aware batch-block sizing ---------------------------------
    vmem_cap = _vmem_capacity_bytes()
    budget = min(int(0.45 * vmem_cap), 96 * 1024 * 1024)
    # Per batch row resident in VMEM: double-buffered input (F wide) and
    # output (3F wide) tiles plus ~8 f32 compute temporaries (x, d, dd, taps).
    per_row = T * F * (2 * in_isz + 2 * 3 * out_isz + 8 * 4)
    bb_cap = max(1, budget // max(per_row, 1))
    # Keep at least min(B, 4) grid steps: v7x has 2 TensorCores and the
    # pipeline needs more than one step to overlap DMA with compute at all.
    bb_cap = min(bb_cap, max(1, B // min(B, 4)))
    if block_batch is not None:
        bb_cap = max(1, min(bb_cap, int(block_batch)))
    # Divisor of B -> no wrapper-side batch pad / output slice copies.
    # TODO(synk): for a large prime B a cdiv grid with a clipped tail block
    # would keep tiles big; unnecessary at lipreading batch sizes.
    BB = _largest_divisor_leq(B, bb_cap)

    vmem_limit = int(min(0.70 * vmem_cap, 100 * 1024 * 1024))

    kernel = functools.partial(_delta_layer_kernel, window=window)
    out = pl.pallas_call(
        kernel,
        out_shape=jax.ShapeDtypeStruct((B, T, 3 * F), out_dtype),
        grid=(B // BB,),
        in_specs=[pl.BlockSpec((BB, T, F), lambda b: (b, 0, 0))],
        # TODO(synk): add pipeline_mode=pl.Buffered(3) to the output spec if a
        # profile ever shows the asymmetric 3F writeback stream exposed.
        out_specs=pl.BlockSpec((BB, T, 3 * F), lambda b: (b, 0, 0)),
        compiler_params=pltpu.CompilerParams(
            dimension_semantics=("parallel",),     # batch tiles are independent
            vmem_limit_bytes=vmem_limit),
        cost_estimate=pl.CostEstimate(
            # two delta passes, W taps each, ~3 flops (sub, mul, add) per elem
            flops=2 * 3 * window * B * T * F,
            transcendentals=0,
            # bytes: read x (F wide) + write out (3F wide)
            bytes_accessed=B * T * F * (in_isz + 3 * out_isz)),
    )(x)
    return out


def _reference_delta_layer(inp, window):
    """Literal JAX transcription of the PyTorch forward (loops over i, j)."""
    def one_pass(x):
        B, T, F = x.shape
        y = jnp.concatenate(
            [jnp.repeat(x[:, :1, :], window, axis=1),
             x,
             jnp.repeat(x[:, -1:, :], window, axis=1)], axis=1)
        z = jnp.zeros_like(x)
        for i in range(T):
            acc = jnp.zeros((B, F), x.dtype)
            for j in range(1, window + 1):
                acc = acc + (y[:, i + window + j, :]
                             - y[:, i + window - j, :]) / (2 * j)
            z = z.at[:, i, :].set(acc)
        return z

    delta = one_pass(inp)
    double_delta = one_pass(delta)
    return jnp.concatenate([inp, delta, double_delta], axis=2)


if __name__ == "__main__":
    window = 2
    key = jax.random.PRNGKey(0)

    # Case 1: lane-dense output fast path (F % 128 == 0 -> unmasked stores).
    b1, t1, f1 = 2, 8, 128
    x1 = jax.random.normal(key, (b1, t1, f1), jnp.float32)
    out1 = jax.block_until_ready(delta_layer_forward(x1, window))
    ref1 = _reference_delta_layer(x1, window)
    assert out1.shape == (b1, t1, 3 * f1), out1.shape
    assert jnp.allclose(out1, ref1, atol=1e-5, rtol=1e-5), (
        float(jnp.max(jnp.abs(out1 - ref1))))

    # Case 2: small-feature fallback path (3F = 96 < 128 -> masked stores).
    b2, t2, f2 = 2, 8, 32
    x2 = jax.random.normal(jax.random.fold_in(key, 1), (b2, t2, f2), jnp.float32)
    out2 = jax.block_until_ready(delta_layer_forward(x2, window))
    ref2 = _reference_delta_layer(x2, window)
    assert out2.shape == (b2, t2, 3 * f2), out2.shape
    assert jnp.allclose(out2, ref2, atol=1e-5, rtol=1e-5), (
        float(jnp.max(jnp.abs(out2 - ref2))))

    print("KERNEL_OK")
</pallas_src>

<mosaic_0001>
module attributes {stable_mosaic.version = 11 : i64} {
  func.func @_delta_layer_kernel(%arg0: i32, %arg1: memref<1x8x128xf32, #tpu.memory_space<vmem>>, %arg2: memref<1x8x384xf32, #tpu.memory_space<vmem>>) attributes {dimension_semantics = [#tpu.dimension_semantics<parallel>], iteration_bounds = array<i64: 2>, scalar_prefetch = 0 : i64, scratch_operands = 0 : i64, tpu.core_type = #tpu.core_type<tc>, window_params = [{transform_indices = @transform_0, window_bounds = array<i64: 1, 8, 128>}, {transform_indices = @transform_1, window_bounds = array<i64: 1, 8, 384>}]} {
    %c0 = arith.constant 0 : index
    %c0_0 = arith.constant 0 : index
    %c0_1 = arith.constant 0 : index
    %0 = vector.load %arg1[%c0, %c0_0, %c0_1] : memref<1x8x128xf32, #tpu.memory_space<vmem>>, vector<1x8x128xf32>
    %1 = vector.extract_strided_slice %0 {offsets = [0, 0, 0], sizes = [1, 1, 128], strides = [1, 1, 1]} : vector<1x8x128xf32> to vector<1x1x128xf32>
    %2 = vector.extract_strided_slice %0 {offsets = [0, 7, 0], sizes = [1, 1, 128], strides = [1, 1, 1]} : vector<1x8x128xf32> to vector<1x1x128xf32>
    %3 = vector.extract_strided_slice %0 {offsets = [0, 1, 0], sizes = [1, 7, 128], strides = [1, 1, 1]} : vector<1x8x128xf32> to vector<1x7x128xf32>
    %4 = tpu.concatenate %3, %2 in 1 : vector<1x7x128xf32>, vector<1x1x128xf32> -> vector<1x8x128xf32>
    %5 = vector.extract_strided_slice %0 {offsets = [0, 0, 0], sizes = [1, 7, 128], strides = [1, 1, 1]} : vector<1x8x128xf32> to vector<1x7x128xf32>
    %6 = tpu.concatenate %1, %5 in 1 : vector<1x1x128xf32>, vector<1x7x128xf32> -> vector<1x8x128xf32>
    %7 = arith.subf %4, %6 : vector<1x8x128xf32>
    %cst = arith.constant 5.000000e-01 : f32
    %8 = vector.broadcast %cst : f32 to vector<1x8x128xf32>
    %9 = arith.mulf %7, %8 : vector<1x8x128xf32>
    %10 = vector.extract_strided_slice %0 {offsets = [0, 2, 0], sizes = [1, 6, 128], strides = [1, 1, 1]} : vector<1x8x128xf32> to vector<1x6x128xf32>
    %11 = vector.shape_cast %2 : vector<1x1x128xf32> to vector<1x1x128xf32>
    %12 = vector.broadcast %11 : vector<1x1x128xf32> to vector<1x2x128xf32>
    %13 = tpu.concatenate %10, %12 in 1 : vector<1x6x128xf32>, vector<1x2x128xf32> -> vector<1x8x128xf32>
    %14 = vector.shape_cast %1 : vector<1x1x128xf32> to vector<1x1x128xf32>
    %15 = vector.broadcast %14 : vector<1x1x128xf32> to vector<1x2x128xf32>
    %16 = vector.extract_strided_slice %0 {offsets = [0, 0, 0], sizes = [1, 6, 128], strides = [1, 1, 1]} : vector<1x8x128xf32> to vector<1x6x128xf32>
    %17 = tpu.concatenate %15, %16 in 1 : vector<1x2x128xf32>, vector<1x6x128xf32> -> vector<1x8x128xf32>
    %18 = arith.subf %13, %17 : vector<1x8x128xf32>
    %cst_2 = arith.constant 2.500000e-01 : f32
    %19 = vector.broadcast %cst_2 : f32 to vector<1x8x128xf32>
    %20 = arith.mulf %18, %19 : vector<1x8x128xf32>
    %21 = arith.addf %9, %20 : vector<1x8x128xf32>
    %22 = vector.extract_strided_slice %21 {offsets = [0, 0, 0], sizes = [1, 1, 128], strides = [1, 1, 1]} : vector<1x8x128xf32> to vector<1x1x128xf32>
    %23 = vector.extract_strided_slice %21 {offsets = [0, 7, 0], sizes = [1, 1, 128], strides = [1, 1, 1]} : vector<1x8x128xf32> to vector<1x1x128xf32>
    %24 = vector.extract_strided_slice %21 {offsets = [0, 1, 0], sizes = [1, 7, 128], strides = [1, 1, 1]} : vector<1x8x128xf32> to vector<1x7x128xf32>
    %25 = tpu.concatenate %24, %23 in 1 : vector<1x7x128xf32>, vector<1x1x128xf32> -> vector<1x8x128xf32>
    %26 = vector.extract_strided_slice %21 {offsets = [0, 0, 0], sizes = [1, 7, 128], strides = [1, 1, 1]} : vector<1x8x128xf32> to vector<1x7x128xf32>
    %27 = tpu.concatenate %22, %26 in 1 : vector<1x1x128xf32>, vector<1x7x128xf32> -> vector<1x8x128xf32>
    %28 = arith.subf %25, %27 : vector<1x8x128xf32>
    %cst_3 = arith.constant 5.000000e-01 : f32
    %29 = vector.broadcast %cst_3 : f32 to vector<1x8x128xf32>
    %30 = arith.mulf %28, %29 : vector<1x8x128xf32>
    %31 = vector.extract_strided_slice %21 {offsets = [0, 2, 0], sizes = [1, 6, 128], strides = [1, 1, 1]} : vector<1x8x128xf32> to vector<1x6x128xf32>
    %32 = vector.shape_cast %23 : vector<1x1x128xf32> to vector<1x1x128xf32>
    %33 = vector.broadcast %32 : vector<1x1x128xf32> to vector<1x2x128xf32>
    %34 = tpu.concatenate %31, %33 in 1 : vector<1x6x128xf32>, vector<1x2x128xf32> -> vector<1x8x128xf32>
    %35 = vector.shape_cast %22 : vector<1x1x128xf32> to vector<1x1x128xf32>
    %36 = vector.broadcast %35 : vector<1x1x128xf32> to vector<1x2x128xf32>
    %37 = vector.extract_strided_slice %21 {offsets = [0, 0, 0], sizes = [1, 6, 128], strides = [1, 1, 1]} : vector<1x8x128xf32> to vector<1x6x128xf32>
    %38 = tpu.concatenate %36, %37 in 1 : vector<1x2x128xf32>, vector<1x6x128xf32> -> vector<1x8x128xf32>
    %39 = arith.subf %34, %38 : vector<1x8x128xf32>
    %cst_4 = arith.constant 2.500000e-01 : f32
    %40 = vector.broadcast %cst_4 : f32 to vector<1x8x128xf32>
    %41 = arith.mulf %39, %40 : vector<1x8x128xf32>
    %42 = arith.addf %30, %41 : vector<1x8x128xf32>
    %c0_5 = arith.constant 0 : index
    %c0_6 = arith.constant 0 : index
    %c0_7 = arith.constant 0 : index
    %43 = vector.load %arg2[%c0_5, %c0_6, %c0_7] : memref<1x8x384xf32, #tpu.memory_space<vmem>>, vector<1x8x128xf32>
    tpu.vector_store %arg2[%c0_5, %c0_6, %c0_7], %0 {strides = array<i32>} : memref<1x8x384xf32, #tpu.memory_space<vmem>>, vector<1x8x128xf32>,
    %c0_8 = arith.constant 0 : index
    %c0_9 = arith.constant 0 : index
    %c128 = arith.constant 128 : index
    %44 = vector.load %arg2[%c0_8, %c0_9, %c128] : memref<1x8x384xf32, #tpu.memory_space<vmem>>, vector<1x8x128xf32>
    tpu.vector_store %arg2[%c0_8, %c0_9, %c128], %21 {strides = array<i32>} : memref<1x8x384xf32, #tpu.memory_space<vmem>>, vector<1x8x128xf32>,
    %c0_10 = arith.constant 0 : index
    %c0_11 = arith.constant 0 : index
    %c256 = arith.constant 256 : index
    %45 = vector.load %arg2[%c0_10, %c0_11, %c256] : memref<1x8x384xf32, #tpu.memory_space<vmem>>, vector<1x8x128xf32>
    tpu.vector_store %arg2[%c0_10, %c0_11, %c256], %42 {strides = array<i32>} : memref<1x8x384xf32, #tpu.memory_space<vmem>>, vector<1x8x128xf32>,
    return
  }
  func.func @transform_0(%arg0: i32) -> (i32, i32, i32) {
    %c0_i32 = arith.constant 0 : i32
    %c0_i32_0 = arith.constant 0 : i32
    %c0_i32_1 = arith.constant 0 : i32
    return %arg0, %c0_i32, %c0_i32_0 : i32, i32, i32
  }
  func.func @transform_1(%arg0: i32) -> (i32, i32, i32) {
    %c0_i32 = arith.constant 0 : i32
    %c0_i32_0 = arith.constant 0 : i32
    %c0_i32_1 = arith.constant 0 : i32
    return %arg0, %c0_i32, %c0_i32_0 : i32, i32, i32
  }
}

</mosaic_0001>

<llo_original>
// kernel: tpu_custom_call.1
$region0: #{tpu_custom_call.1}
  #allocation0 [shape = 'u32[]', space=smem, size = 0x4, offset = 0x4, fixed_abs, tag = 'smem constant byte address 0x4 - core index']
  #allocation1 [shape = 'u32[144,128]{1,0:T(1,128)}', space=vmem, size = 0x12000, scoped, tag = 'internal scratch']
  %s0 = inlined_call_operand.hbm [shape: f32[2,8,128], index: 0, kind: input, shape index: {}]
  %s1 = inlined_call_operand.hbm [shape: f32[2,8,384], index: 1, kind: output, shape index: {}]
  %s2 = sld [smem:[#allocation0]]
  $region41: #{tpu_custom_call.1} parent=0
    _
  %s4 = ssub.s32 1, %s2
  %s5 = scalar_select 0, %s4, %s2
  $region1: #{tpu_custom_call.1} parent=0
    #allocation2 [shape = 'u8[8192]{0}', space=vmem, size = 0x2000, scoped, tag = 'input window, operand 0']
    #allocation3 [shape = 's32[2]{0}', space=sflag, size = 0x8, scoped, tag = 'scoped memory for tpu_custom_call.1']
    #allocation4 [shape = 's32[2]{0}', space=sflag, size = 0x8, scoped, tag = 'scoped memory for tpu_custom_call.1']
    #allocation5 [shape = 'u8[24576]{0}', space=vmem, size = 0x6000, scoped, tag = 'output window, operand 0']
    %6 = vsyncpa [#allocation3], 0
    %s7 = scalar_lea.sflag [#allocation3], 1
    %8 = vsyncpa %s7, 0
    %9 = vsyncpa [#allocation4], 0
    %s10 = scalar_lea.sflag [#allocation4], 1
    %11 = vsyncpa %s10, 0
    loop: start=0, step=1, limit=4
    $region2: #{tpu_custom_call.1} parent=1 // loop_pre_header
      _
    $region3: #{tpu_custom_call.1} parent=1 // loop_header
      %s13 = sphi 0, %s17
      %p14 = scmp.ge.s32.totalorder %s13, 4
      %s23 = sphi 0, %s25
      %s26 = sphi 0, %s23
      %s27 = sphi 0, %s26
      %s43 = sphi 0, %s27
      %s49 = sphi 0, %s51
      %s52 = sphi 0, %s49
      %s53 = sphi 0, %s52
      %s69 = sphi 0, %s53
    $region4: #{tpu_custom_call.1} parent=1 // loop_header_branch
      %16 = sbr.rel (%p14) target = $region8
    $region5: #{tpu_custom_call.1} parent=1 // loop_body
      %s18 = ssub.s32 %s13, 1
      %s19 = ssub.s32 %s13, 2
      %s20 = sadd.s32 %s13, 1
      %s21 = ssub.s32 %s13, %s20
      %p22 = scmp.eq.s32.totalorder %s21, 0
      %s24 = sadd.s32 %s23, 1
      %s25 = scalar_select %p22, %s23, %s24
      %p28 = pneg %p22
      %p29 = scmp.eq.s32.totalorder %s13, 1
      %p30 = por %p28, %p29
      %p31 = scmp.ne.s32.totalorder %s23, %s26
      %p32 = scmp.eq.s32.totalorder %s13, 0
      %p33 = por %p31, %p32
      %p34 = scmp.ne.s32.totalorder %s23, %s26
      %p35 = scmp.eq.s32.totalorder %s18, 1
      %p36 = por %p34, %p35
      %p37 = scmp.ne.s32.totalorder %s26, %s27
      %p38 = scmp.eq.s32.totalorder %s18, 0
      %p39 = por %p37, %p38
      %p40 = scmp.ne.s32.totalorder %s26, %s27
      %p41 = scmp.eq.s32.totalorder %s19, 1
      %p42 = por %p40, %p41
      %p44 = scmp.ne.s32.totalorder %s27, %s43
      %p45 = scmp.eq.s32.totalorder %s19, 0
      %p46 = por %p44, %p45
      %s47 = ssub.s32 %s13, %s20
      %p48 = scmp.eq.s32.totalorder %s47, 0
      %s50 = sadd.s32 %s49, 1
      %s51 = scalar_select %p48, %s49, %s50
      %p54 = pneg %p48
      %p55 = scmp.eq.s32.totalorder %s13, 1
      %p56 = por %p54, %p55
      %p57 = scmp.ne.s32.totalorder %s49, %s52
      %p58 = scmp.eq.s32.totalorder %s13, 0
      %p59 = por %p57, %p58
      %p60 = scmp.ne.s32.totalorder %s49, %s52
      %p61 = scmp.eq.s32.totalorder %s18, 1
      %p62 = por %p60, %p61
      %p63 = scmp.ne.s32.totalorder %s52, %s53
      %p64 = scmp.eq.s32.totalorder %s18, 0
      %p65 = por %p63, %p64
      %p66 = scmp.ne.s32.totalorder %s52, %s53
      %p67 = scmp.eq.s32.totalorder %s19, 1
      %p68 = por %p66, %p67
      %p70 = scmp.ne.s32.totalorder %s53, %s69
      %p71 = scmp.eq.s32.totalorder %s19, 0
      %p72 = por %p70, %p71
      %p73 = scmp.le.s32.totalorder 1, %s13
      %p74 = scmp.lt.s32.totalorder %s13, 3
      %p75 = pnand %p73, %p74
      %p76 = pneg %p75
      // Predicated region
      $region9: #{tpu_custom_call.1} parent=5 // pred_check
        _
      $region10: #{tpu_custom_call.1} parent=5 // pred_check_branch
        %78 = sbr.rel (%p75) target = $region12
      $region11: #{tpu_custom_call.1} parent=5 // pred_region
        %s79 = ssub.s32 %s13, 1
      $region12: #{tpu_custom_call.1} parent=5 // pred_fallthru
        _
      %p80 = scmp.lt.s32.totalorder %s13, 2
      // Predicated region
      $region13: #{tpu_custom_call.1} parent=5 // pred_check
        %p81 = pneg %p80
      $region14: #{tpu_custom_call.1} parent=5 // pred_check_branch
        %83 = sbr.rel (%p81) target = $region16
      $region15: #{tpu_custom_call.1} parent=5 // pred_region
        // Predicated region
        $region17: #{tpu_custom_call.1} parent=15 // pred_check
          %p84 = pneg %p33
        $region18: #{tpu_custom_call.1} parent=15 // pred_check_branch
          %86 = sbr.rel (%p84) target = $region20
        $region19: #{tpu_custom_call.1} parent=15 // pred_region
          %s87 = sand.u32 %s23, 1
          %s88 = scalar_lea.sflag [#allocation3], %s87
          %s89 = sand.u32 %s23, 1
          %s90 = smul.addr %s89, 8
          %s91 = scalar_lea.vmem [#allocation2], %s90
          %s93 = ssub.s32 128, 128
          %94 = vsyncadd %s88, %s93
          %s95 = smul.addr %s13, 128
          %s96 = scalar_lea.hbm %s0, %s95
          %s98 = sshll.u32 %s91, 4
          %s99 = int_to_ptr.vmem [resolvable:$true] %s98
          %101 = dma.hbm_to_vmem [thread:$0]  %s96, 128, %s99, %s88
        $region20: #{tpu_custom_call.1} parent=15 // pred_fallthru
          _
      $region16: #{tpu_custom_call.1} parent=5 // pred_fallthru
        _
      %p102 = scmp.le.s32.totalorder 1, %s13
      %p103 = scmp.lt.s32.totalorder %s13, 3
      %p104 = pnand %p102, %p103
      %p105 = pneg %p104
      // Predicated region
      $region21: #{tpu_custom_call.1} parent=5 // pred_check
        _
      $region22: #{tpu_custom_call.1} parent=5 // pred_check_branch
        %107 = sbr.rel (%p104) target = $region24
      $region23: #{tpu_custom_call.1} parent=5 // pred_region
        %s108 = ssub.s32 %s13, 1
        %s109 = sand.u32 %s26, 1
        %s110 = scalar_lea.sflag [#allocation3], %s109
        %s111 = sand.u32 %s26, 1
        %s112 = smul.addr %s111, 8
        %s113 = scalar_lea.vmem [#allocation2], %s112
        // Predicated region
        $region25: #{tpu_custom_call.1} parent=23 // pred_check
          %p114 = pneg %p39
        $region26: #{tpu_custom_call.1} parent=23 // pred_check_branch
          %116 = sbr.rel (%p114) target = $region28
        $region27: #{tpu_custom_call.1} parent=23 // pred_region
          %117 = dma.done %s110, 128
        $region28: #{tpu_custom_call.1} parent=23 // pred_fallthru
          _
        %s118 = sand.u32 %s26, 1
        %s119 = scalar_lea.sflag [#allocation3], %s118
        %s120 = sand.u32 %s26, 1
        %s121 = smul.addr %s120, 8
        %s122 = scalar_lea.vmem [#allocation2], %s121
        %p123 = pneg %p39
        %p124 = pneg %p36
        %p125 = pneg %p65
        %p126 = pneg %p62
        %s127 = sand.u32 %s52, 1
        %s128 = scalar_lea.sflag [#allocation4], %s127
        %s129 = sand.u32 %s52, 1
        %s130 = smul.addr %s129, 24
        %s131 = scalar_lea.vmem [#allocation5], %s130
        %v132 = vld [vmem:[%s113] sm:$0xff]
        %v134 = vrot.slane %v132, 1
        %vm136 = vcmask 1046528
        %v137 = vsel %vm136, %v134, %v132
        %v138 = vrot.slane %v132, 7
        %vm140 = vcmask 1040384
        %v141 = vsel %vm140, %v132, %v138
        %v142 = vsub.f32 %v137, %v141
        %v143 = vmul.f32 %v142, 0.5
        %v144 = vlaneseq
        %v145 = vshrl.u32 %v144, 7
        %v146 = vsub.s32 7, %v145
        %v147 = vrot.slane %v132, %v146
        %v148 = vrot.slane %v132, 2
        %vm150 = vcmask 1045504
        %v151 = vsel %vm150, %v148, %v147
        %v152 = vlaneseq
        %v153 = vshrl.u32 %v152, 7
        %v154 = vsub.s32 0, %v153
        %v155 = vrot.slane %v132, %v154
        %v156 = vrot.slane %v132, 6
        %vm158 = vcmask 1041408
        %v159 = vsel %vm158, %v155, %v156
        %v160 = vsub.f32 %v151, %v159
        %v161 = vmul.f32 %v160, 0.25
        %v162 = vadd.f32 %v143, %v161
        %v164 = vrot.slane %v162, 1
        %v166 = vsel %vm136, %v164, %v162
        %v167 = vrot.slane %v162, 7
        %v169 = vsel %vm140, %v162, %v167
        %v170 = vsub.f32 %v166, %v169
        %v171 = vmul.f32 %v170, 0.5
        %v172 = vlaneseq
        %v173 = vshrl.u32 %v172, 7
        %v174 = vsub.s32 7, %v173
        %v175 = vrot.slane %v162, %v174
        %v176 = vrot.slane %v162, 2
        %v178 = vsel %vm150, %v176, %v175
        %v179 = vlaneseq
        %v180 = vshrl.u32 %v179, 7
        %v181 = vsub.s32 0, %v180
        %v182 = vrot.slane %v162, %v181
        %v183 = vrot.slane %v162, 6
        %v185 = vsel %vm158, %v182, %v183
        %v186 = vsub.f32 %v178, %v185
        %v187 = vmul.f32 %v186, 0.25
        %v188 = vadd.f32 %v171, %v187
        %189 = vst [vmem:[%s131] sm:$0xff] %v132
        %190 = vst [vmem:[%s131 + $0x8] sm:$0xff] %v162
        %191 = vst [vmem:[%s131 + $0x10] sm:$0xff] %v188
        %s192 = sand.u32 %s52, 1
        %s193 = scalar_lea.sflag [#allocation4], %s192
        %s194 = sand.u32 %s52, 1
        %s195 = smul.addr %s194, 24
        %s196 = scalar_lea.vmem [#allocation5], %s195
        // Predicated region
        $region29: #{tpu_custom_call.1} parent=23 // pred_check
          %p197 = pneg %p62
        $region30: #{tpu_custom_call.1} parent=23 // pred_check_branch
          %199 = sbr.rel (%p197) target = $region32
        $region31: #{tpu_custom_call.1} parent=23 // pred_region
          %s201 = ssub.s32 384, 384
          %202 = vsyncadd %s193, %s201
          %s203 = smul.addr %s18, 3
          %s204 = smul.addr %s203, 128
          %s205 = scalar_lea.hbm %s1, %s204
          %s207 = sshll.u32 %s196, 4
          %s208 = int_to_ptr.vmem [resolvable:$true] %s207
          %210 = dma.vmem_to_hbm [thread:$0]  %s208, 384, %s205, %s193
        $region32: #{tpu_custom_call.1} parent=23 // pred_fallthru
          _
      $region24: #{tpu_custom_call.1} parent=5 // pred_fallthru
        _
      %p211 = scmp.le.s32.totalorder 2, %s13
      // Predicated region
      $region33: #{tpu_custom_call.1} parent=5 // pred_check
        %p212 = pneg %p211
      $region34: #{tpu_custom_call.1} parent=5 // pred_check_branch
        %214 = sbr.rel (%p212) target = $region36
      $region35: #{tpu_custom_call.1} parent=5 // pred_region
        %s215 = ssub.s32 %s13, 2
        // Predicated region
        $region37: #{tpu_custom_call.1} parent=35 // pred_check
          %p216 = pneg %p68
        $region38: #{tpu_custom_call.1} parent=35 // pred_check_branch
          %218 = sbr.rel (%p216) target = $region40
        $region39: #{tpu_custom_call.1} parent=35 // pred_region
          %s219 = sand.u32 %s53, 1
          %s220 = scalar_lea.sflag [#allocation4], %s219
          %s221 = sand.u32 %s53, 1
          %s222 = smul.addr %s221, 24
          %s223 = scalar_lea.vmem [#allocation5], %s222
          %224 = dma.done %s220, 384
        $region40: #{tpu_custom_call.1} parent=35 // pred_fallthru
          _
      $region36: #{tpu_custom_call.1} parent=5 // pred_fallthru
        _
    $region6: #{tpu_custom_call.1} parent=1 // loop_footer
      %s17 = sadd.s32 1, %s13
    $region7: #{tpu_custom_call.1} parent=1 // loop_footer_branch
      %12 = sbr.rel target = $region3
    $region8: #{tpu_custom_call.1} parent=1 // loop_exit
      _
    %225 = vsyncpa [#allocation3], 1
    %s226 = scalar_lea.sflag [#allocation3], 1
    %227 = vsyncpa %s226, 1
    %228 = vsyncpa [#allocation4], 1
    %s229 = scalar_lea.sflag [#allocation4], 1
    %230 = vsyncpa %s229, 1

</llo_original>
